<compile_context>
chip_gen: v7x
topology: tpu7x:2x2x1
jax: 0.10.0
libtpu: 0.0.40
codegen_flags: <defaults>
</compile_context>

<pallas_src>
import jax
import jax.numpy as jnp
from jax.experimental import pallas as pl
from jax.experimental.pallas import tpu as pltpu

_LANE = 128
_SUBLANE = 8


def _round_up(x, m):
    return ((x + m - 1) // m) * m


def _make_policy_kernel(tile_rows, total_rows, need_mask):
    """Per-tile partial of -sum(pi * p_log); f32 accumulation."""

    def kernel(p_log_ref, pi_ref, out_ref):
        p_log = p_log_ref[...].astype(jnp.float32)
        pi = pi_ref[...].astype(jnp.float32)
        prod = pi * p_log
        if need_mask:
            # Ragged last tile: out-of-bounds rows contain unspecified data,
            # so mask the *product* (select never does arithmetic on the
            # deselected operand, so garbage/NaN cannot leak into the sum).
            row0 = pl.program_id(0) * tile_rows
            rows = row0 + jax.lax.broadcasted_iota(jnp.int32, prod.shape, 0)
            prod = jnp.where(rows < total_rows, prod, 0.0)
        # Lane-dense broadcast store of this tile's scalar partial.
        out_ref[...] = jnp.full(out_ref.shape, -jnp.sum(prod), dtype=jnp.float32)

    return kernel


def alphazero_loss(p_log, pi, v, z, *, block_rows=None):
    """p_log, pi: (B, A); v, z: (B, 1). Returns scalar f32 loss."""
    B, A = p_log.shape
    assert pi.shape == (B, A)
    assert v.shape == (B, 1) and z.shape == (B, 1)

    # Value term: O(B), trivially fused by XLA; keeps the kernel a pure
    # 2-stream reduce and frees two resident VMEM buffers.
    value_sum = jnp.sum((z.astype(jnp.float32) - v.astype(jnp.float32)) ** 2)

    # Fast path: the loss is a full reduce, so row structure is irrelevant.
    # If B*A is a multiple of 128, flatten to perfectly lane-dense rows of 128
    # (metadata-only reshape of contiguous data, no padding, no masking of
    # lanes). Otherwise keep (B, A) and use the full A as the last block dim.
    if (B * A) % _LANE == 0:
        R, C = (B * A) // _LANE, _LANE
        p2 = p_log.reshape(R, C)
        pi2 = pi.reshape(R, C)
    else:
        R, C = B, A
        p2, pi2 = p_log, pi

    itemsize = max(jnp.dtype(p_log.dtype).itemsize, jnp.dtype(pi.dtype).itemsize)

    # Generation-aware VMEM budget: 2 streamed inputs x 2 pipeline buffers.
    try:
        info = pltpu.get_tpu_info()
        vmem_cap = getattr(info, "vmem_capacity_bytes", 64 * 1024 * 1024)
    except Exception:  # pragma: no cover - conservative fallback
        vmem_cap = 64 * 1024 * 1024
    if vmem_cap >= 100 * 1024 * 1024:      # v5e / v6e: 128 MiB VMEM
        budget = 48 * 1024 * 1024
        vmem_limit = 96 * 1024 * 1024
    else:                                   # v7x: 64 MiB VMEM
        budget = 24 * 1024 * 1024
        vmem_limit = 40 * 1024 * 1024

    c_lanes = _round_up(C, _LANE)           # VMEM footprint counts padded lanes

    if R <= _SUBLANE:
        # Tiny input: single block whose row dim equals the full array dim
        # (legal even when not a multiple of 8); no masking needed.
        tr = R
    elif block_rows is not None:
        tr = max(_SUBLANE, _round_up(block_rows, _SUBLANE))
        tr = min(tr, _round_up(R, _SUBLANE))
    else:
        tr = budget // (2 * 2 * c_lanes * itemsize)
        tr = max(_SUBLANE, (tr // _SUBLANE) * _SUBLANE)
        tr = min(tr, _round_up(R, _SUBLANE))
        if tr >= R:
            # A single tile would leave one v7x TensorCore idle: split so the
            # "parallel" grid axis gives each core ~half the batch. Costs one
            # extra ~0.35 us step elsewhere (negligible).
            tr = max(_SUBLANE, _round_up((R + 1) // 2, _SUBLANE))

    num_tiles = pl.cdiv(R, tr)
    need_mask = (R % tr) != 0

    kernel = _make_policy_kernel(tr, R, need_mask)

    cost = pl.CostEstimate(
        flops=2 * R * C,
        transcendentals=0,
        bytes_accessed=2 * R * C * itemsize + num_tiles * _SUBLANE * _LANE * 4,
    )

    partials = pl.pallas_call(
        kernel,
        out_shape=jax.ShapeDtypeStruct((num_tiles, _SUBLANE, _LANE), jnp.float32),
        grid=(num_tiles,),
        in_specs=[
            pl.BlockSpec((tr, C), lambda i: (i, 0)),   # p_log tile (streamed)
            pl.BlockSpec((tr, C), lambda i: (i, 0)),   # pi tile    (streamed)
        ],
        out_specs=pl.BlockSpec((1, _SUBLANE, _LANE), lambda i: (i, 0, 0)),
        compiler_params=pltpu.CompilerParams(
            dimension_semantics=("parallel",),
            vmem_limit_bytes=vmem_limit,
        ),
        cost_estimate=cost,
    )(p2, pi2)

    # One element per tile carries that tile's partial sum.
    policy_sum = jnp.sum(partials[:, 0, 0])
    return (policy_sum + value_sum) / B


def _reference(p_log, pi, v, z):
    loss_v = (z - v) ** 2
    loss_p = -jnp.sum(pi * p_log, axis=1)
    return jnp.mean(loss_v.reshape(-1) + loss_p)


def _make_inputs(key, B, A):
    k1, k2, k3, k4 = jax.random.split(key, 4)
    logits_p = jax.random.normal(k1, (B, A), dtype=jnp.float32)
    logits_t = jax.random.normal(k2, (B, A), dtype=jnp.float32)
    p_log = jax.nn.log_softmax(logits_p, axis=1)            # network log-policy
    pi = jax.nn.softmax(logits_t, axis=1)                   # target policy
    v = jnp.tanh(jax.random.normal(k3, (B, 1), dtype=jnp.float32))
    z = jnp.sign(jax.random.normal(k4, (B, 1), dtype=jnp.float32))
    return p_log, pi, v, z


if __name__ == "__main__":
    key = jax.random.PRNGKey(0)
    k_a, k_b, k_c = jax.random.split(key, 3)

    # Case 1: B*A % 128 == 0 -> flattened lane-dense fast path, single tile.
    p_log, pi, v, z = _make_inputs(k_a, 8, 64)
    out = jax.block_until_ready(alphazero_loss(p_log, pi, v, z))
    ref = jax.block_until_ready(_reference(p_log, pi, v, z))
    assert jnp.allclose(out, ref, atol=1e-5, rtol=1e-5), (out, ref)

    # Case 2: awkward shapes (B=13, A=100) -> (tb, A) tiling, 2 tiles,
    # ragged-row iota mask in the last tile (no jnp.pad anywhere).
    p_log, pi, v, z = _make_inputs(k_b, 13, 100)
    out = jax.block_until_ready(alphazero_loss(p_log, pi, v, z))
    ref = jax.block_until_ready(_reference(p_log, pi, v, z))
    assert jnp.allclose(out, ref, atol=1e-5, rtol=1e-5), (out, ref)

    # Case 3: flattened fast path with a ragged multi-tile grid (B=16, A=96).
    p_log, pi, v, z = _make_inputs(k_c, 16, 96)
    out = jax.block_until_ready(alphazero_loss(p_log, pi, v, z))
    ref = jax.block_until_ready(_reference(p_log, pi, v, z))
    assert jnp.allclose(out, ref, atol=1e-5, rtol=1e-5), (out, ref)

    print("KERNEL_OK")
</pallas_src>

<mosaic_0001>
module attributes {stable_mosaic.version = 11 : i64} {
  func.func @kernel(%arg0: i32, %arg1: memref<4x128xf32, #tpu.memory_space<vmem>>, %arg2: memref<4x128xf32, #tpu.memory_space<vmem>>, %arg3: memref<1x8x128xf32, #tpu.memory_space<vmem>>) attributes {dimension_semantics = [#tpu.dimension_semantics<parallel>], iteration_bounds = array<i64: 1>, scalar_prefetch = 0 : i64, scratch_operands = 0 : i64, tpu.core_type = #tpu.core_type<tc>, window_params = [{transform_indices = @transform_0, window_bounds = array<i64: 4, 128>}, {transform_indices = @transform_1, window_bounds = array<i64: 4, 128>}, {transform_indices = @transform_2, window_bounds = array<i64: 1, 8, 128>}]} {
    %c0 = arith.constant 0 : index
    %c0_0 = arith.constant 0 : index
    %0 = vector.load %arg1[%c0, %c0_0] : memref<4x128xf32, #tpu.memory_space<vmem>>, vector<4x128xf32>
    %c0_1 = arith.constant 0 : index
    %c0_2 = arith.constant 0 : index
    %1 = vector.load %arg2[%c0_1, %c0_2] : memref<4x128xf32, #tpu.memory_space<vmem>>, vector<4x128xf32>
    %2 = arith.mulf %1, %0 : vector<4x128xf32>
    %3 = vector.shape_cast %2 : vector<4x128xf32> to vector<1x4x128xf32>
    %cst = arith.constant dense<0.000000e+00> : vector<1xf32>
    %4 = vector.multi_reduction <add>, %3, %cst [1, 2] : vector<1x4x128xf32> to vector<1xf32>
    %5 = vector.shape_cast %4 : vector<1xf32> to vector<1x1x1xf32>
    %6 = vector.extract %5[0, 0, 0] : f32 from vector<1x1x1xf32>
    %cst_3 = arith.constant 0.000000e+00 : f32
    %7 = arith.subf %cst_3, %6 : f32
    %8 = vector.broadcast %7 : f32 to vector<1x8x128xf32>
    %c0_4 = arith.constant 0 : index
    %c0_5 = arith.constant 0 : index
    %c0_6 = arith.constant 0 : index
    %9 = vector.load %arg3[%c0_4, %c0_5, %c0_6] : memref<1x8x128xf32, #tpu.memory_space<vmem>>, vector<1x8x128xf32>
    tpu.vector_store %arg3[%c0_4, %c0_5, %c0_6], %8 {strides = array<i32>} : memref<1x8x128xf32, #tpu.memory_space<vmem>>, vector<1x8x128xf32>,
    return
  }
  func.func @transform_0(%arg0: i32) -> (i32, i32) {
    %c0_i32 = arith.constant 0 : i32
    %c0_i32_0 = arith.constant 0 : i32
    return %arg0, %c0_i32 : i32, i32
  }
  func.func @transform_1(%arg0: i32) -> (i32, i32) {
    %c0_i32 = arith.constant 0 : i32
    %c0_i32_0 = arith.constant 0 : i32
    return %arg0, %c0_i32 : i32, i32
  }
  func.func @transform_2(%arg0: i32) -> (i32, i32, i32) {
    %c0_i32 = arith.constant 0 : i32
    %c0_i32_0 = arith.constant 0 : i32
    %c0_i32_1 = arith.constant 0 : i32
    return %arg0, %c0_i32, %c0_i32_0 : i32, i32, i32
  }
}

</mosaic_0001>

<llo_original>
// kernel: tpu_custom_call.1
$region0: #{tpu_custom_call.1}
  #allocation0 [shape = 'u32[]', space=smem, size = 0x4, offset = 0x4, fixed_abs, tag = 'smem constant byte address 0x4 - core index']
  #allocation1 [shape = 'u32[144,128]{1,0:T(1,128)}', space=vmem, size = 0x12000, scoped, tag = 'internal scratch']
  %s0 = inlined_call_operand.hbm [shape: f32[4,128], index: 0, kind: input, shape index: {}]
  %s1 = inlined_call_operand.hbm [shape: f32[4,128], index: 1, kind: input, shape index: {}]
  %s2 = inlined_call_operand.hbm [shape: f32[1,8,128], index: 2, kind: output, shape index: {}]
  %s3 = sld [smem:[#allocation0]]
  $region26: #{tpu_custom_call.1} parent=0
    _
  %s5 = ssub.s32 1, %s3
  %s6 = scalar_select 0, %s5, %s3
  $region1: #{tpu_custom_call.1} parent=0
    #allocation2 [shape = 'u8[2048]{0}', space=vmem, size = 0x800, scoped, tag = 'input window, operand 0, single buffered']
    #allocation3 [shape = 's32[1]{0}', space=sflag, size = 0x4, scoped, tag = 'scoped memory for tpu_custom_call.1']
    #allocation4 [shape = 's32[1]{0}', space=sflag, size = 0x4, scoped, tag = 'scoped memory for tpu_custom_call.1']
    #allocation5 [shape = 'u8[2048]{0}', space=vmem, size = 0x800, scoped, tag = 'input window, operand 1, single buffered']
    #allocation6 [shape = 's32[1]{0}', space=sflag, size = 0x4, scoped, tag = 'scoped memory for tpu_custom_call.1']
    #allocation7 [shape = 'u8[4096]{0}', space=vmem, size = 0x1000, scoped, tag = 'output window, operand 0, single buffered']
    %7 = vsyncpa [#allocation3], 0
    %8 = vsyncpa [#allocation6], 0
    %9 = vsyncpa [#allocation4], 0
    // Predicated region
    $region2: #{tpu_custom_call.1} parent=1 // pred_check
      _
    $region3: #{tpu_custom_call.1} parent=1 // pred_check_branch
      %11 = sbr.rel (0) target = $region5
    $region4: #{tpu_custom_call.1} parent=1 // pred_region
      %s13 = ssub.s32 64, 64
      %14 = vsyncadd [#allocation3], %s13
      %s16 = sshll.u32 [#allocation2], 4
      %s17 = int_to_ptr.vmem [resolvable:$true] %s16
      %19 = dma.hbm_to_vmem [thread:$0]  %s0, 64, %s17, [#allocation3]
    $region5: #{tpu_custom_call.1} parent=1 // pred_fallthru
      _
    // Predicated region
    $region6: #{tpu_custom_call.1} parent=1 // pred_check
      _
    $region7: #{tpu_custom_call.1} parent=1 // pred_check_branch
      %21 = sbr.rel (0) target = $region9
    $region8: #{tpu_custom_call.1} parent=1 // pred_region
      %s23 = ssub.s32 64, 64
      %24 = vsyncadd [#allocation6], %s23
      %s26 = sshll.u32 [#allocation5], 4
      %s27 = int_to_ptr.vmem [resolvable:$true] %s26
      %29 = dma.hbm_to_vmem [thread:$0]  %s1, 64, %s27, [#allocation6]
    $region9: #{tpu_custom_call.1} parent=1 // pred_fallthru
      _
    // Predicated region
    $region10: #{tpu_custom_call.1} parent=1 // pred_check
      _
    $region11: #{tpu_custom_call.1} parent=1 // pred_check_branch
      %31 = sbr.rel (0) target = $region13
    $region12: #{tpu_custom_call.1} parent=1 // pred_region
      %32 = dma.done [#allocation3], 64
    $region13: #{tpu_custom_call.1} parent=1 // pred_fallthru
      _
    // Predicated region
    $region14: #{tpu_custom_call.1} parent=1 // pred_check
      _
    $region15: #{tpu_custom_call.1} parent=1 // pred_check_branch
      %34 = sbr.rel (0) target = $region17
    $region16: #{tpu_custom_call.1} parent=1 // pred_region
      %35 = dma.done [#allocation6], 64
    $region17: #{tpu_custom_call.1} parent=1 // pred_fallthru
      _
    %v36 = vld [vmem:[#allocation2] sm:$0xf]
    %v37 = vld [vmem:[#allocation5] sm:$0xf]
    %v38 = vmul.f32 %v37, %v36
    %vm39 = vcmask 1043456
    %v40 = vsel %vm39, %v38, 0.0
    %41 = vadd.xlane.f32.xlu0 %v40
    %v42 = vpop.xlane.xlu0 %41
    %v43 = vrot.slane %v42, 4
    %v44 = vadd.f32 %v42, %v43
    %v45 = vrot.slane %v44, 2
    %v46 = vadd.f32 %v44, %v45
    %v47 = vrot.slane %v46, 1
    %v48 = vadd.f32 %v46, %v47
    %s49 = vtos %v48
    %s50 = ssub.f32 0.0, %s49
    %v51 = vstv %s50
    %52 = vst [vmem:[#allocation7] sm:$0xff] %v51
    // Predicated region
    $region18: #{tpu_custom_call.1} parent=1 // pred_check
      _
    $region19: #{tpu_custom_call.1} parent=1 // pred_check_branch
      %54 = sbr.rel (0) target = $region21
    $region20: #{tpu_custom_call.1} parent=1 // pred_region
      %s56 = ssub.s32 128, 128
      %57 = vsyncadd [#allocation4], %s56
      %s59 = sshll.u32 [#allocation7], 4
      %s60 = int_to_ptr.vmem [resolvable:$true] %s59
      %62 = dma.vmem_to_hbm [thread:$0]  %s60, 128, %s2, [#allocation4]
    $region21: #{tpu_custom_call.1} parent=1 // pred_fallthru
      _
    // Predicated region
    $region22: #{tpu_custom_call.1} parent=1 // pred_check
      _
    $region23: #{tpu_custom_call.1} parent=1 // pred_check_branch
      %64 = sbr.rel (0) target = $region25
    $region24: #{tpu_custom_call.1} parent=1 // pred_region
      %65 = dma.done [#allocation4], 128
    $region25: #{tpu_custom_call.1} parent=1 // pred_fallthru
      _
    %66 = vsyncpa [#allocation3], 1
    %67 = vsyncpa [#allocation6], 1
    %68 = vsyncpa [#allocation4], 1

</llo_original>
